<compile_context>
chip_gen: v7x
topology: tpu7x:2x2x1
jax: 0.10.0
libtpu: 0.0.40
codegen_flags: <defaults>
</compile_context>

<pallas_src>
import functools
import math

import jax
import jax.numpy as jnp
from jax.experimental import pallas as pl
from jax.experimental.pallas import tpu as pltpu


# ----------------------------------------------------------------------------
# Pallas kernel: one grid step per block of Th hops (no cross-step state).
# ----------------------------------------------------------------------------
def _phaser_block_kernel(frames_ref, h_ref, cw_ref, dw_ref, out_ref, *,
                         B, Th, hpf, hop, Kp, span, span_pad):
    # frames_ref : (B*Th, N)      bf16  row = b*Th + t (batch-major hop blocks)
    # h_ref      : (Th, 2*Kp)     f32   per-hop transfer fn, packed [Hr | Hi]
    # cw_ref     : (N, 2*Kp)      bf16  hann-folded forward DFT  [Cr | Ci]
    # dw_ref     : (2*Kp, N)      bf16  hann-folded hermitian inverse DFT
    # out_ref    : (B, span_pad)  f32   OLA span of this block (lane-padded)
    M = Th + hpf - 1                                # block span in hops

    # (1) forward windowed real DFT for all B*Th frames: one bf16 MXU pass.
    s = jnp.dot(frames_ref[...], cw_ref[...],
                preferred_element_type=jnp.float32)            # (B*Th, 2Kp) f32

    # (2) complex spectral multiply with the per-hop transfer function:
    #     one dense elementwise pass, broadcasting H over the batch axis.
    s3 = s.reshape(B, Th, 2 * Kp)
    xr, xi = s3[:, :, :Kp], s3[:, :, Kp:]
    hr = h_ref[:, :Kp].reshape(1, Th, Kp)
    hi = h_ref[:, Kp:].reshape(1, Th, Kp)
    y_spec = jnp.concatenate([xr * hr - xi * hi, xr * hi + xi * hr], axis=-1)
    y_spec = y_spec.reshape(B * Th, 2 * Kp).astype(jnp.bfloat16)

    # (3) hermitian inverse DFT + synthesis window: one bf16 MXU pass.
    y = jnp.dot(y_spec, dw_ref[...],
                preferred_element_type=jnp.float32)            # (B*Th, N) f32

    # (4) overlap-add, diagonal form: hpf shifted slab adds (whole-hop shifts
    #     along a separate axis) instead of Th unaligned lane-offset adds.
    acc = None
    for j in range(hpf):
        yj = y[:, j * hop:(j + 1) * hop].reshape(B, Th, hop)   # sub-frame j
        pieces = []
        if j > 0:
            pieces.append(jnp.zeros((B, j, hop), jnp.float32))
        pieces.append(yj)
        if hpf - 1 - j > 0:
            pieces.append(jnp.zeros((B, hpf - 1 - j, hop), jnp.float32))
        shifted = pieces[0] if len(pieces) == 1 else jnp.concatenate(pieces, axis=1)
        acc = shifted if acc is None else acc + shifted        # (B, M, hop)

    out = acc.reshape(B, span)
    if span_pad > span:                                        # lane-dense store
        out = jnp.concatenate(
            [out, jnp.zeros((B, span_pad - span), jnp.float32)], axis=-1)
    out_ref[...] = out


def phaser_ola_pallas(frames, Hcat, Cw, Dw, *, Th, B, hop, N, Kp, hpf,
                      span, span_pad):
    num_blocks = frames.shape[0]
    Kp2 = 2 * Kp
    BTh = B * Th

    kernel = functools.partial(_phaser_block_kernel, B=B, Th=Th, hpf=hpf,
                               hop=hop, Kp=Kp, span=span, span_pad=span_pad)

    # Scoped-VMEM budget: bf16 residents (counted double-buffered), streamed
    # per-block tiles (double-buffered) and the value intermediates.
    bf2, f4 = 2, 4
    est = (2 * (Cw.size + Dw.size) * bf2
           + 2 * (BTh * N * bf2 + Th * Kp2 * f4 + B * span_pad * f4)
           + (3 * BTh * Kp2 + BTh * N + 2 * B * span_pad) * f4)
    try:
        # Generation-adaptive cap: ~96 MiB on v5e/v6e (128 MiB VMEM),
        # ~48 MiB on v7x (64 MiB VMEM).
        vmem_cap = int(pltpu.get_tpu_info().vmem_capacity_bytes)
    except Exception:
        vmem_cap = 64 * 2 ** 20
    vmem_limit = int(min(max(2 * est, 16 * 2 ** 20), (3 * vmem_cap) // 4))

    return pl.pallas_call(
        kernel,
        out_shape=jax.ShapeDtypeStruct((num_blocks, B, span_pad), jnp.float32),
        grid_spec=pltpu.PrefetchScalarGridSpec(
            num_scalar_prefetch=0,
            grid=(num_blocks,),
            in_specs=[
                pl.BlockSpec((pl.Squeezed(), BTh, N), lambda g: (g, 0, 0)),
                pl.BlockSpec((Th, Kp2), lambda g: (g, 0)),      # [Hr | Hi] / hop
                pl.BlockSpec((N, Kp2), lambda g: (0, 0)),       # fwd DFT (resident)
                pl.BlockSpec((Kp2, N), lambda g: (0, 0)),       # inv DFT (resident)
            ],
            out_specs=pl.BlockSpec((pl.Squeezed(), B, span_pad),
                                   lambda g: (g, 0, 0)),
        ),
        compiler_params=pltpu.CompilerParams(
            dimension_semantics=("parallel",),    # no carry -> blocks independent
            vmem_limit_bytes=vmem_limit),
    )(frames, Hcat, Cw, Dw)


# ----------------------------------------------------------------------------
# Plain-JAX glue: parameters, LFO, MLP, biquads, transfer function, framing.
# ----------------------------------------------------------------------------
def hann_window(N):
    n = jnp.arange(N, dtype=jnp.float32)
    return 0.5 - 0.5 * jnp.cos(2.0 * jnp.pi * n / N)     # periodic Hann


def dft_matrices_folded(N, Nfft, Kb, Kp, hann):
    """Windowed, packed DFT matrices (bf16 residents, f32 accumulation in-kernel).

    Cw (N, 2*Kp)  = hann[:,None] * [Cr | Ci]   (forward half-spectrum DFT)
    Dw (2*Kp, N)  = [Dr ; Di] * hann[None,:]   (hermitian inverse DFT)
    Frequency axis zero-padded from Kb to Kp (Kp multiple of 128 so the
    [Re | Im] halves are lane-aligned).
    """
    n = jnp.arange(N, dtype=jnp.int32)
    k = jnp.arange(Kb, dtype=jnp.int32)
    ang_f = (2.0 * jnp.pi / Nfft) * ((n[:, None] * k[None, :]) % Nfft).astype(jnp.float32)
    Cr = jnp.cos(ang_f)
    Ci = -jnp.sin(ang_f)
    # Re(ifft(make_hermitian(Y)))[n] = sum_k w_k (Yr cos - Yi sin) / Nfft
    w = jnp.full((Kb,), 2.0, jnp.float32).at[0].set(1.0).at[-1].set(1.0)
    ang_i = (2.0 * jnp.pi / Nfft) * ((k[:, None] * n[None, :]) % Nfft).astype(jnp.float32)
    Dr = (w[:, None] * jnp.cos(ang_i)) / Nfft
    Di = (-w[:, None] * jnp.sin(ang_i)) / Nfft

    Cw = jnp.zeros((N, 2 * Kp), jnp.float32)
    Cw = Cw.at[:, :Kb].set(Cr).at[:, Kp:Kp + Kb].set(Ci)
    Cw = hann[:, None] * Cw                     # analysis window folded in

    Dw = jnp.zeros((2 * Kp, N), jnp.float32)
    Dw = Dw.at[:Kb, :].set(Dr).at[Kp:Kp + Kb, :].set(Di)
    Dw = Dw * hann[None, :]                     # synthesis window folded in
    # TODO(synk): at realistic Nfft (e.g. 4096) additionally tile Kp with an
    # extra grid axis + f32 accumulator so the residents stay under v7x's
    # 64 MiB VMEM even when double-buffered.
    return Cw.astype(jnp.bfloat16), Dw.astype(jnp.bfloat16)


def init_mlp(key, width, n_hidden_layers):
    dims = [1] + [width] * n_hidden_layers + [1]
    params = []
    for i in range(len(dims) - 1):
        key, k1, k2 = jax.random.split(key, 3)
        scale = 1.0 / math.sqrt(dims[i])
        W = scale * jax.random.normal(k1, (dims[i], dims[i + 1]), jnp.float32)
        b = 0.01 * jax.random.normal(k2, (dims[i + 1],), jnp.float32)
        params.append((W, b))
    return params


def mlp_forward(params, x):
    # TODO(synk): exact MLP topology of the reference repo is not given;
    # assumed tanh after every layer (incl. output) so the waveshaped LFO
    # stays in [-1, 1].
    h = x
    for (W, b) in params:
        h = jnp.tanh(h @ W + b)
    return h


def biquad_response(ff, fb, zi, normalise):
    # TODO(synk): z_utils.Biquad normalisation semantics assumed = divide by b0.
    b0, b1, b2 = ff[0], ff[1], ff[2]
    a1, a2 = fb[0], fb[1]
    H = (b0 + b1 * zi + b2 * zi ** 2) / (1.0 + a1 * zi + a2 * zi ** 2)
    if normalise:
        H = H / b0.astype(jnp.complex64)
    return H


def transfer_function(p, zi, h1, h2, g1, g2, phi, K):
    # p: (num_hops, 1) real allpass coefficient per hop; zi, h1, h2: (Kb,) complex
    pc = p.astype(jnp.complex64)
    a = ((pc - zi) / (1.0 - pc * zi)) ** K
    denom = 1.0 - (zi ** jax.nn.relu(phi)) * jnp.abs(g2) * h2 * a
    return h1 * (g1 + h2 * a / denom)                     # (num_hops, Kb)


def make_phaser(key, sample_rate, window_length=0.05, overlap_factor=0.75,
                mlp_width=16, mlp_layers=3, num_filters=4, f0=1.0):
    hpf = int(1.0 / (1.0 - overlap_factor))
    window_size = hpf * math.floor(window_length * sample_rate / hpf)
    hop_size = window_size // hpf
    Nfft = 2 ** math.ceil(math.log2(window_size))
    k_depth, k_bias, k_mlp = jax.random.split(key, 3)
    fs_hop = sample_rate / hop_size
    w0 = 2.0 * math.pi * f0 / fs_hop
    return dict(
        sample_rate=sample_rate, window_size=window_size, hop_size=hop_size,
        Nfft=Nfft, K=num_filters,
        g1=jnp.array([1.0], jnp.float32),
        g2=jnp.array([0.01], jnp.float32),
        phi=jnp.array([0.5], jnp.float32),
        depth=0.5 * jax.random.uniform(k_depth, (1,), jnp.float32),
        bias=0.1 * jax.random.uniform(k_bias, (1,), jnp.float32),
        lfo_za=jnp.array([0.999 * math.cos(w0), 0.999 * math.sin(w0)], jnp.float32),
        lfo_zb=jnp.array([1.0, 0.0], jnp.float32),
        mlp=init_mlp(k_mlp, mlp_width, mlp_layers),
        ff1=jnp.array([1.0, 0.3, 0.1], jnp.float32),
        fb1=jnp.array([-0.2, 0.05], jnp.float32),
        ff2=jnp.array([1.0, -0.4, 0.2], jnp.float32),
        fb2=jnp.array([0.1, -0.05], jnp.float32),
    )


def _control(x, ph):
    """LFO -> MLP waveshaper -> allpass coeff -> per-hop transfer function."""
    B, seq = x.shape
    N = ph['window_size']; hop = ph['hop_size']; Nfft = ph['Nfft']
    Kb = Nfft // 2 + 1
    num_hops = math.ceil(seq / hop)
    Npad = N // 2

    time = jnp.arange(num_hops, dtype=jnp.float32).reshape(num_hops, 1)
    za = (ph['lfo_za'][0] + 1j * ph['lfo_za'][1]).astype(jnp.complex64)
    zb = (ph['lfo_zb'][0] + 1j * ph['lfo_zb'][1]).astype(jnp.complex64)
    lfo = jnp.real(zb * jnp.power(za, time))              # damped oscillator
    ws = mlp_forward(ph['mlp'], lfo)                      # waveshaped LFO
    d = ph['bias'] + ph['depth'] * 0.5 * (1.0 + ws)
    p = (1.0 - jnp.tan(d)) / (1.0 + jnp.tan(d))           # (num_hops, 1)

    zi = jnp.exp(-2j * jnp.pi * jnp.arange(Kb) / Nfft).astype(jnp.complex64)
    h1 = biquad_response(ph['ff1'], ph['fb1'], zi, normalise=False)
    h2 = biquad_response(ph['ff2'], ph['fb2'], zi, normalise=True)
    H = transfer_function(p, zi, h1, h2, ph['g1'][0], ph['g2'][0],
                          ph['phi'][0], ph['K'])          # (num_hops, Kb) complex

    x_pad = jnp.pad(x, ((0, 0), (Npad, Npad))).astype(jnp.float32)
    hann = hann_window(N)
    sizes = dict(N=N, hop=hop, Nfft=Nfft, Kb=Kb, num_hops=num_hops,
                 Npad=Npad, seq=seq, B=B)
    return x_pad, H, hann, sizes


def phaser_forward(x, ph, block_hops=128):
    x_pad, H, hann, s = _control(x, ph)
    B, seq = s['B'], s['seq']
    N, hop, Nfft, Kb = s['N'], s['hop'], s['Nfft'], s['Kb']
    num_hops, Npad = s['num_hops'], s['Npad']
    hpf = N // hop

    # Th hops per grid step: multiple of 8 (sublane-aligned H blocks) and
    # >= hpf so a block's OLA tail only spills into the NEXT block.  The
    # default (128 hops) makes the matmul M dimension B*Th >= 256 at B=2.
    Th = 8 * math.ceil(max(block_hops, hpf) / 8)
    num_hops_pad = Th * math.ceil((num_hops + hpf - 1) / Th)
    num_blocks = num_hops_pad // Th
    Kp = 128 * math.ceil(Kb / 128)        # [Re | Im] halves are lane-aligned
    out_w = Th * hop
    tail_w = N - hop
    span = out_w + tail_w
    span_pad = 128 * math.ceil(span / 128)   # lane-dense output blocks

    # Framed audio, batch-major hop blocks, bf16 (1 MXU pass, half HBM read).
    # TODO(synk): for long sequences, stream the overlapping spans straight
    # from x_pad (pl.Element offsets / manual DMA) instead of materializing
    # the 1/(1-overlap)-times larger frames array — biggest win on v5e HBM.
    idx = hop * jnp.arange(num_hops)[:, None] + jnp.arange(N)[None, :]
    frames = x_pad[:, idx]                                    # (B, num_hops, N)
    frames = jnp.pad(frames, ((0, 0), (0, num_hops_pad - num_hops), (0, 0)))
    frames = (frames.reshape(B, num_blocks, Th, N)
              .transpose(1, 0, 2, 3)
              .reshape(num_blocks, B * Th, N)
              .astype(jnp.bfloat16))

    # Per-hop transfer function, packed [Re | Im] and zero-padded.  Padded
    # hops carry H == 0 so they contribute exactly nothing to the OLA.
    Hcat = jnp.zeros((num_hops_pad, 2 * Kp), jnp.float32)
    Hcat = Hcat.at[:num_hops, :Kb].set(jnp.real(H).astype(jnp.float32))
    Hcat = Hcat.at[:num_hops, Kp:Kp + Kb].set(jnp.imag(H).astype(jnp.float32))

    Cw, Dw = dft_matrices_folded(N, Nfft, Kb, Kp, hann)

    chunks = phaser_ola_pallas(frames, Hcat, Cw, Dw, Th=Th, B=B, hop=hop,
                               N=N, Kp=Kp, hpf=hpf, span=span,
                               span_pad=span_pad)             # (nb, B, span_pad)

    # Merge adjacent block tails with cheap elementwise JAX (the serial carry
    # is gone, so the Pallas grid axis is fully parallel).
    main = jnp.transpose(chunks[:, :, :out_w], (1, 0, 2)).reshape(
        B, num_blocks * out_w)
    tails = chunks[:, :, out_w:span]                          # (nb, B, tail_w)
    tails = jnp.pad(tails, ((0, 0), (0, 0), (0, out_w - tail_w)))
    tails = jnp.transpose(tails, (1, 0, 2)).reshape(B, num_blocks * out_w)
    y = main.at[:, out_w:].add(tails[:, :num_blocks * out_w - out_w])

    ola_gain = 3.0 / 8.0 * (N / hop)
    return y[:, Npad:Npad + seq] / ola_gain


def phaser_forward_reference(x, ph):
    """Pure-JAX (FFT-based) reference mirroring the torch forward loop."""
    x_pad, H, hann, s = _control(x, ph)
    N, hop, Nfft, Kb = s['N'], s['hop'], s['Nfft'], s['Kb']
    num_hops, Npad, seq, B = s['num_hops'], s['Npad'], s['seq'], s['B']
    out = jnp.zeros_like(x_pad)
    for m in range(num_hops):
        frame = x_pad[:, m * hop:m * hop + N]
        X = jnp.fft.fft(hann * frame, Nfft)[:, :Kb]
        Y = X * H[m]
        Ysym = jnp.concatenate([Y, jnp.conj(Y[:, 1:-1][:, ::-1])], axis=1)
        yf = jnp.real(jnp.fft.ifft(Ysym))[:, :N]
        out = out.at[:, m * hop:m * hop + N].add(hann * yf)
    ola_gain = 3.0 / 8.0 * (N / hop)
    return out[:, Npad:Npad + seq] / ola_gain


if __name__ == "__main__":
    key = jax.random.PRNGKey(0)
    sample_rate = 1000          # -> window_size=48, hop=12, Nfft=64, Kb=33
    ph = make_phaser(key, sample_rate)

    B, seq = 2, 96
    x = jax.random.normal(jax.random.fold_in(key, 123), (B, seq), jnp.float32)

    # block_hops=8 -> 2 hop-blocks, exercising the cross-block tail merge.
    y = phaser_forward(x, ph, block_hops=8)
    y = jax.block_until_ready(y)

    y_ref = phaser_forward_reference(x, ph)
    assert y.shape == (B, seq)
    assert bool(jnp.all(jnp.isfinite(y)))
    err = float(jnp.max(jnp.abs(y - y_ref)))
    # bf16 matmul inputs (f32 accumulation): typical max error ~5e-3 on
    # outputs of magnitude ~5; tolerance leaves ~4x headroom while still
    # being <1% of the signal scale.
    assert err < 2.5e-2, f"kernel/reference mismatch: max abs err = {err}"

    print("KERNEL_OK")
</pallas_src>

<mosaic_0001>
module attributes {stable_mosaic.version = 11 : i64} {
  func.func @_phaser_block_kernel(%arg0: i32, %arg1: memref<1x16x48xbf16, #tpu.memory_space<vmem>>, %arg2: memref<8x256xf32, #tpu.memory_space<vmem>>, %arg3: memref<48x256xbf16, #tpu.memory_space<vmem>>, %arg4: memref<256x48xbf16, #tpu.memory_space<vmem>>, %arg5: memref<1x2x256xf32, #tpu.memory_space<vmem>>) attributes {dimension_semantics = [#tpu.dimension_semantics<parallel>], iteration_bounds = array<i64: 2>, scalar_prefetch = 0 : i64, scratch_operands = 0 : i64, tpu.core_type = #tpu.core_type<tc>, window_params = [{transform_indices = @transform_0, window_bounds = array<i64: 1, 16, 48>}, {transform_indices = @transform_1, window_bounds = array<i64: 8, 256>}, {pipeline_mode = #tpu.pipeline_mode<synchronous>, transform_indices = @transform_2, window_bounds = array<i64: 48, 256>}, {pipeline_mode = #tpu.pipeline_mode<synchronous>, transform_indices = @transform_3, window_bounds = array<i64: 256, 48>}, {transform_indices = @transform_4, window_bounds = array<i64: 1, 2, 256>}]} {
    %c0 = arith.constant 0 : index
    %c0_0 = arith.constant 0 : index
    %c0_1 = arith.constant 0 : index
    %0 = vector.load %arg1[%c0, %c0_0, %c0_1] : memref<1x16x48xbf16, #tpu.memory_space<vmem>>, vector<1x16x48xbf16>
    %1 = vector.shape_cast %0 : vector<1x16x48xbf16> to vector<16x48xbf16>
    %c0_2 = arith.constant 0 : index
    %c0_3 = arith.constant 0 : index
    %2 = vector.load %arg3[%c0_2, %c0_3] : memref<48x256xbf16, #tpu.memory_space<vmem>>, vector<48x256xbf16>
    %cst = arith.constant dense<0.000000e+00> : vector<16x256xf32>
    %3 = tpu.matmul %1, %2, %cst {dimension_numbers = #tpu.dot_dimension_numbers<[1], [0], [0], [1], [0, 0, 1, 1], [], []>} : vector<16x48xbf16>, vector<48x256xbf16>, vector<16x256xf32> -> vector<16x256xf32>
    %4 = vector.shape_cast %3 : vector<16x256xf32> to vector<2x8x256xf32>
    %5 = vector.extract_strided_slice %4 {offsets = [0, 0, 0], sizes = [2, 8, 128], strides = [1, 1, 1]} : vector<2x8x256xf32> to vector<2x8x128xf32>
    %6 = vector.extract_strided_slice %4 {offsets = [0, 0, 128], sizes = [2, 8, 128], strides = [1, 1, 1]} : vector<2x8x256xf32> to vector<2x8x128xf32>
    %c0_4 = arith.constant 0 : index
    %c0_5 = arith.constant 0 : index
    %7 = vector.load %arg2[%c0_4, %c0_5] : memref<8x256xf32, #tpu.memory_space<vmem>>, vector<8x128xf32>
    %8 = vector.shape_cast %7 : vector<8x128xf32> to vector<1x8x128xf32>
    %c0_6 = arith.constant 0 : index
    %c128 = arith.constant 128 : index
    %9 = vector.load %arg2[%c0_6, %c128] : memref<8x256xf32, #tpu.memory_space<vmem>>, vector<8x128xf32>
    %10 = vector.shape_cast %9 : vector<8x128xf32> to vector<1x8x128xf32>
    %11 = vector.broadcast %8 : vector<1x8x128xf32> to vector<2x8x128xf32>
    %12 = arith.mulf %5, %11 : vector<2x8x128xf32>
    %13 = vector.broadcast %10 : vector<1x8x128xf32> to vector<2x8x128xf32>
    %14 = arith.mulf %6, %13 : vector<2x8x128xf32>
    %15 = arith.subf %12, %14 : vector<2x8x128xf32>
    %16 = vector.broadcast %10 : vector<1x8x128xf32> to vector<2x8x128xf32>
    %17 = arith.mulf %5, %16 : vector<2x8x128xf32>
    %18 = vector.broadcast %8 : vector<1x8x128xf32> to vector<2x8x128xf32>
    %19 = arith.mulf %6, %18 : vector<2x8x128xf32>
    %20 = arith.addf %17, %19 : vector<2x8x128xf32>
    %21 = tpu.concatenate %15, %20 in 2 : vector<2x8x128xf32>, vector<2x8x128xf32> -> vector<2x8x256xf32>
    %22 = vector.shape_cast %21 : vector<2x8x256xf32> to vector<16x256xf32>
    %23 = arith.truncf %22 : vector<16x256xf32> to vector<16x256xbf16>
    %c0_7 = arith.constant 0 : index
    %c0_8 = arith.constant 0 : index
    %24 = vector.load %arg4[%c0_7, %c0_8] : memref<256x48xbf16, #tpu.memory_space<vmem>>, vector<256x48xbf16>
    %cst_9 = arith.constant dense<0.000000e+00> : vector<16x48xf32>
    %25 = tpu.matmul %23, %24, %cst_9 {dimension_numbers = #tpu.dot_dimension_numbers<[1], [0], [0], [1], [0, 0, 1, 1], [], []>} : vector<16x256xbf16>, vector<256x48xbf16>, vector<16x48xf32> -> vector<16x48xf32>
    %26 = vector.extract_strided_slice %25 {offsets = [0, 0], sizes = [16, 12], strides = [1, 1]} : vector<16x48xf32> to vector<16x12xf32>
    %27 = vector.shape_cast %26 : vector<16x12xf32> to vector<2x8x12xf32>
    %cst_10 = arith.constant 0.000000e+00 : f32
    %28 = vector.broadcast %cst_10 : f32 to vector<2x3x12xf32>
    %29 = tpu.concatenate %27, %28 in 1 : vector<2x8x12xf32>, vector<2x3x12xf32> -> vector<2x11x12xf32>
    %30 = vector.extract_strided_slice %25 {offsets = [0, 12], sizes = [16, 12], strides = [1, 1]} : vector<16x48xf32> to vector<16x12xf32>
    %31 = vector.shape_cast %30 : vector<16x12xf32> to vector<2x8x12xf32>
    %cst_11 = arith.constant 0.000000e+00 : f32
    %32 = vector.broadcast %cst_11 : f32 to vector<2x1x12xf32>
    %cst_12 = arith.constant 0.000000e+00 : f32
    %33 = vector.broadcast %cst_12 : f32 to vector<2x2x12xf32>
    %34 = tpu.concatenate %32, %31, %33 in 1 : vector<2x1x12xf32>, vector<2x8x12xf32>, vector<2x2x12xf32> -> vector<2x11x12xf32>
    %35 = arith.addf %29, %34 : vector<2x11x12xf32>
    %36 = vector.extract_strided_slice %25 {offsets = [0, 24], sizes = [16, 12], strides = [1, 1]} : vector<16x48xf32> to vector<16x12xf32>
    %37 = vector.shape_cast %36 : vector<16x12xf32> to vector<2x8x12xf32>
    %cst_13 = arith.constant 0.000000e+00 : f32
    %38 = vector.broadcast %cst_13 : f32 to vector<2x2x12xf32>
    %cst_14 = arith.constant 0.000000e+00 : f32
    %39 = vector.broadcast %cst_14 : f32 to vector<2x1x12xf32>
    %40 = tpu.concatenate %38, %37, %39 in 1 : vector<2x2x12xf32>, vector<2x8x12xf32>, vector<2x1x12xf32> -> vector<2x11x12xf32>
    %41 = arith.addf %35, %40 : vector<2x11x12xf32>
    %42 = vector.extract_strided_slice %25 {offsets = [0, 36], sizes = [16, 12], strides = [1, 1]} : vector<16x48xf32> to vector<16x12xf32>
    %43 = vector.shape_cast %42 : vector<16x12xf32> to vector<2x8x12xf32>
    %cst_15 = arith.constant 0.000000e+00 : f32
    %44 = vector.broadcast %cst_15 : f32 to vector<2x3x12xf32>
    %45 = tpu.concatenate %44, %43 in 1 : vector<2x3x12xf32>, vector<2x8x12xf32> -> vector<2x11x12xf32>
    %46 = arith.addf %41, %45 : vector<2x11x12xf32>
    %47 = vector.shape_cast %46 : vector<2x11x12xf32> to vector<2x132xf32>
    %cst_16 = arith.constant 0.000000e+00 : f32
    %48 = vector.broadcast %cst_16 : f32 to vector<2x124xf32>
    %49 = tpu.concatenate %47, %48 in 1 : vector<2x132xf32>, vector<2x124xf32> -> vector<2x256xf32>
    %c0_17 = arith.constant 0 : index
    %c0_18 = arith.constant 0 : index
    %c0_19 = arith.constant 0 : index
    %50 = vector.load %arg5[%c0_17, %c0_18, %c0_19] : memref<1x2x256xf32, #tpu.memory_space<vmem>>, vector<1x2x256xf32>
    %51 = vector.shape_cast %50 : vector<1x2x256xf32> to vector<2x256xf32>
    %52 = vector.shape_cast %49 : vector<2x256xf32> to vector<1x2x256xf32>
    tpu.vector_store %arg5[%c0_17, %c0_18, %c0_19], %52 {strides = array<i32>} : memref<1x2x256xf32, #tpu.memory_space<vmem>>, vector<1x2x256xf32>,
    return
  }
  func.func @transform_0(%arg0: i32) -> (i32, i32, i32) {
    %c0_i32 = arith.constant 0 : i32
    %c0_i32_0 = arith.constant 0 : i32
    %c0_i32_1 = arith.constant 0 : i32
    return %arg0, %c0_i32, %c0_i32_0 : i32, i32, i32
  }
  func.func @transform_1(%arg0: i32) -> (i32, i32) {
    %c0_i32 = arith.constant 0 : i32
    %c0_i32_0 = arith.constant 0 : i32
    return %arg0, %c0_i32 : i32, i32
  }
  func.func @transform_2(%arg0: i32) -> (i32, i32) {
    %c0_i32 = arith.constant 0 : i32
    %c0_i32_0 = arith.constant 0 : i32
    %c0_i32_1 = arith.constant 0 : i32
    return %c0_i32, %c0_i32_0 : i32, i32
  }
  func.func @transform_3(%arg0: i32) -> (i32, i32) {
    %c0_i32 = arith.constant 0 : i32
    %c0_i32_0 = arith.constant 0 : i32
    %c0_i32_1 = arith.constant 0 : i32
    return %c0_i32, %c0_i32_0 : i32, i32
  }
  func.func @transform_4(%arg0: i32) -> (i32, i32, i32) {
    %c0_i32 = arith.constant 0 : i32
    %c0_i32_0 = arith.constant 0 : i32
    %c0_i32_1 = arith.constant 0 : i32
    return %arg0, %c0_i32, %c0_i32_0 : i32, i32, i32
  }
}

</mosaic_0001>

<llo_original>
// kernel: tpu_custom_call.1
$region0: #{tpu_custom_call.1}
  #allocation0 [shape = 'u32[]', space=smem, size = 0x4, offset = 0x4, fixed_abs, tag = 'smem constant byte address 0x4 - core index']
  #allocation1 [shape = 'u32[144,128]{1,0:T(1,128)}', space=vmem, size = 0x12000, scoped, tag = 'internal scratch']
  %s0 = inlined_call_operand.vmem [shape: bf16[2,16,48], index: 0, kind: input, shape index: {}]
  %s1 = inlined_call_operand.vmem [shape: f32[16,256], index: 1, kind: input, shape index: {}]
  %s2 = inlined_call_operand.vmem [shape: bf16[48,256], index: 2, kind: input, shape index: {}]
  %s3 = inlined_call_operand.vmem [shape: bf16[256,48], index: 3, kind: input, shape index: {}]
  %s4 = inlined_call_operand.hbm [shape: f32[2,2,256], index: 4, kind: output, shape index: {}]
  %s5 = sld [smem:[#allocation0]]
  $region49: #{tpu_custom_call.1} parent=0
    _
  %s7 = ssub.s32 1, %s5
  %s8 = scalar_select 0, %s7, %s5
  $region1: #{tpu_custom_call.1} parent=0
    #allocation2 [shape = 'u8[4096]{0}', space=vmem, size = 0x1000, scoped, tag = 'output window, operand 0']
    #allocation3 [shape = 's32[2]{0}', space=sflag, size = 0x8, scoped, tag = 'scoped memory for tpu_custom_call.1']
    %9 = vsyncpa [#allocation3], 0
    %s10 = scalar_lea.sflag [#allocation3], 1
    %11 = vsyncpa %s10, 0
    loop: start=0, step=1, limit=4
    $region2: #{tpu_custom_call.1} parent=1 // loop_pre_header
      _
    $region3: #{tpu_custom_call.1} parent=1 // loop_header
      %s13 = sphi 0, %s17
      %p14 = scmp.ge.s32.totalorder %s13, 4
      %s23 = sphi 0, %s25
      %s26 = sphi 0, %s23
      %s27 = sphi 0, %s26
      %s43 = sphi 0, %s27
      %s49 = sphi 0, %s51
      %s52 = sphi 0, %s49
      %s53 = sphi 0, %s52
      %s69 = sphi 0, %s53
      %s73 = sphi 0, %s73
      %s75 = sphi 0, %s73
      %s76 = sphi 0, %s75
      %s90 = sphi 0, %s76
      %s94 = sphi 0, %s94
      %s96 = sphi 0, %s94
      %s97 = sphi 0, %s96
      %s111 = sphi 0, %s97
      %s117 = sphi 0, %s119
      %s120 = sphi 0, %s117
      %s121 = sphi 0, %s120
      %s137 = sphi 0, %s121
    $region4: #{tpu_custom_call.1} parent=1 // loop_header_branch
      %16 = sbr.rel (%p14) target = $region8
    $region5: #{tpu_custom_call.1} parent=1 // loop_body
      %s18 = ssub.s32 %s13, 1
      %s19 = ssub.s32 %s13, 2
      %s20 = sadd.s32 %s13, 1
      %s21 = ssub.s32 %s13, %s20
      %p22 = scmp.eq.s32.totalorder %s21, 0
      %s24 = sadd.s32 %s23, 1
      %s25 = scalar_select %p22, %s23, %s24
      %p28 = pneg %p22
      %p29 = scmp.eq.s32.totalorder %s13, 1
      %p30 = por %p28, %p29
      %p31 = scmp.ne.s32.totalorder %s23, %s26
      %p32 = scmp.eq.s32.totalorder %s13, 0
      %p33 = por %p31, %p32
      %p34 = scmp.ne.s32.totalorder %s23, %s26
      %p35 = scmp.eq.s32.totalorder %s18, 1
      %p36 = por %p34, %p35
      %p37 = scmp.ne.s32.totalorder %s26, %s27
      %p38 = scmp.eq.s32.totalorder %s18, 0
      %p39 = por %p37, %p38
      %p40 = scmp.ne.s32.totalorder %s26, %s27
      %p41 = scmp.eq.s32.totalorder %s19, 1
      %p42 = por %p40, %p41
      %p44 = scmp.ne.s32.totalorder %s27, %s43
      %p45 = scmp.eq.s32.totalorder %s19, 0
      %p46 = por %p44, %p45
      %s47 = ssub.s32 %s13, %s20
      %p48 = scmp.eq.s32.totalorder %s47, 0
      %s50 = sadd.s32 %s49, 1
      %s51 = scalar_select %p48, %s49, %s50
      %p54 = pneg %p48
      %p55 = scmp.eq.s32.totalorder %s13, 1
      %p56 = por %p54, %p55
      %p57 = scmp.ne.s32.totalorder %s49, %s52
      %p58 = scmp.eq.s32.totalorder %s13, 0
      %p59 = por %p57, %p58
      %p60 = scmp.ne.s32.totalorder %s49, %s52
      %p61 = scmp.eq.s32.totalorder %s18, 1
      %p62 = por %p60, %p61
      %p63 = scmp.ne.s32.totalorder %s52, %s53
      %p64 = scmp.eq.s32.totalorder %s18, 0
      %p65 = por %p63, %p64
      %p66 = scmp.ne.s32.totalorder %s52, %s53
      %p67 = scmp.eq.s32.totalorder %s19, 1
      %p68 = por %p66, %p67
      %p70 = scmp.ne.s32.totalorder %s53, %s69
      %p71 = scmp.eq.s32.totalorder %s19, 0
      %p72 = por %p70, %p71
      %s74 = sadd.s32 %s73, 1
      %p77 = scmp.eq.s32.totalorder %s13, 1
      %p78 = scmp.ne.s32.totalorder %s73, %s75
      %p79 = scmp.eq.s32.totalorder %s13, 0
      %p80 = por %p78, %p79
      %p81 = scmp.ne.s32.totalorder %s73, %s75
      %p82 = scmp.eq.s32.totalorder %s18, 1
      %p83 = por %p81, %p82
      %p84 = scmp.ne.s32.totalorder %s75, %s76
      %p85 = scmp.eq.s32.totalorder %s18, 0
      %p86 = por %p84, %p85
      %p87 = scmp.ne.s32.totalorder %s75, %s76
      %p88 = scmp.eq.s32.totalorder %s19, 1
      %p89 = por %p87, %p88
      %p91 = scmp.ne.s32.totalorder %s76, %s90
      %p92 = scmp.eq.s32.totalorder %s19, 0
      %p93 = por %p91, %p92
      %s95 = sadd.s32 %s94, 1
      %p98 = scmp.eq.s32.totalorder %s13, 1
      %p99 = scmp.ne.s32.totalorder %s94, %s96
      %p100 = scmp.eq.s32.totalorder %s13, 0
      %p101 = por %p99, %p100
      %p102 = scmp.ne.s32.totalorder %s94, %s96
      %p103 = scmp.eq.s32.totalorder %s18, 1
      %p104 = por %p102, %p103
      %p105 = scmp.ne.s32.totalorder %s96, %s97
      %p106 = scmp.eq.s32.totalorder %s18, 0
      %p107 = por %p105, %p106
      %p108 = scmp.ne.s32.totalorder %s96, %s97
      %p109 = scmp.eq.s32.totalorder %s19, 1
      %p110 = por %p108, %p109
      %p112 = scmp.ne.s32.totalorder %s97, %s111
      %p113 = scmp.eq.s32.totalorder %s19, 0
      %p114 = por %p112, %p113
      %s115 = ssub.s32 %s13, %s20
      %p116 = scmp.eq.s32.totalorder %s115, 0
      %s118 = sadd.s32 %s117, 1
      %s119 = scalar_select %p116, %s117, %s118
      %p122 = pneg %p116
      %p123 = scmp.eq.s32.totalorder %s13, 1
      %p124 = por %p122, %p123
      %p125 = scmp.ne.s32.totalorder %s117, %s120
      %p126 = scmp.eq.s32.totalorder %s13, 0
      %p127 = por %p125, %p126
      %p128 = scmp.ne.s32.totalorder %s117, %s120
      %p129 = scmp.eq.s32.totalorder %s18, 1
      %p130 = por %p128, %p129
      %p131 = scmp.ne.s32.totalorder %s120, %s121
      %p132 = scmp.eq.s32.totalorder %s18, 0
      %p133 = por %p131, %p132
      %p134 = scmp.ne.s32.totalorder %s120, %s121
      %p135 = scmp.eq.s32.totalorder %s19, 1
      %p136 = por %p134, %p135
      %p138 = scmp.ne.s32.totalorder %s121, %s137
      %p139 = scmp.eq.s32.totalorder %s19, 0
      %p140 = por %p138, %p139
      %p141 = scmp.le.s32.totalorder 1, %s13
      %p142 = scmp.lt.s32.totalorder %s13, 3
      %p143 = pnand %p141, %p142
      %p144 = pneg %p143
      // Predicated region
      $region9: #{tpu_custom_call.1} parent=5 // pred_check
        _
      $region10: #{tpu_custom_call.1} parent=5 // pred_check_branch
        %146 = sbr.rel (%p143) target = $region12
      $region11: #{tpu_custom_call.1} parent=5 // pred_region
        %s147 = ssub.s32 %s13, 1
        // Predicated region
        $region13: #{tpu_custom_call.1} parent=11 // pred_check
          %p148 = pneg %p86
        $region14: #{tpu_custom_call.1} parent=11 // pred_check_branch
          %150 = sbr.rel (%p148) target = $region16
        $region15: #{tpu_custom_call.1} parent=11 // pred_region
          _
        $region16: #{tpu_custom_call.1} parent=11 // pred_fallthru
          _
        // Predicated region
        $region17: #{tpu_custom_call.1} parent=11 // pred_check
          %p151 = pneg %p107
        $region18: #{tpu_custom_call.1} parent=11 // pred_check_branch
          %153 = sbr.rel (%p151) target = $region20
        $region19: #{tpu_custom_call.1} parent=11 // pred_region
          _
        $region20: #{tpu_custom_call.1} parent=11 // pred_fallthru
          _
      $region12: #{tpu_custom_call.1} parent=5 // pred_fallthru
        _
      %p154 = scmp.lt.s32.totalorder %s13, 2
      // Predicated region
      $region21: #{tpu_custom_call.1} parent=5 // pred_check
        %p155 = pneg %p154
      $region22: #{tpu_custom_call.1} parent=5 // pred_check_branch
        %157 = sbr.rel (%p155) target = $region24
      $region23: #{tpu_custom_call.1} parent=5 // pred_region
        // Predicated region
        $region25: #{tpu_custom_call.1} parent=23 // pred_check
          %p158 = pneg %p33
        $region26: #{tpu_custom_call.1} parent=23 // pred_check_branch
          %160 = sbr.rel (%p158) target = $region28
        $region27: #{tpu_custom_call.1} parent=23 // pred_region
          %p161 = scmp.lt.s32.totalorder %s13, 1
          %s162 = scalar_select %p161, %s13, 1
          %s163 = smul.addr %s162, 2
          %s164 = smul.addr %s163, 4
          %s165 = scalar_lea.vmem %s0, %s164
        $region28: #{tpu_custom_call.1} parent=23 // pred_fallthru
          _
        // Predicated region
        $region29: #{tpu_custom_call.1} parent=23 // pred_check
          %p166 = pneg %p59
        $region30: #{tpu_custom_call.1} parent=23 // pred_check_branch
          %168 = sbr.rel (%p166) target = $region32
        $region31: #{tpu_custom_call.1} parent=23 // pred_region
          %p169 = scmp.lt.s32.totalorder %s13, 1
          %s170 = scalar_select %p169, %s13, 1
          %s171 = smul.addr %s170, 2
          %s172 = smul.addr %s171, 8
          %s173 = scalar_lea.vmem %s1, %s172
        $region32: #{tpu_custom_call.1} parent=23 // pred_fallthru
          _
      $region24: #{tpu_custom_call.1} parent=5 // pred_fallthru
        _
      %p174 = scmp.le.s32.totalorder 1, %s13
      %p175 = scmp.lt.s32.totalorder %s13, 3
      %p176 = pnand %p174, %p175
      %p177 = pneg %p176
      // Predicated region
      $region33: #{tpu_custom_call.1} parent=5 // pred_check
        _
      $region34: #{tpu_custom_call.1} parent=5 // pred_check_branch
        %179 = sbr.rel (%p176) target = $region36
      $region35: #{tpu_custom_call.1} parent=5 // pred_region
        %s180 = ssub.s32 %s13, 1
        %p181 = scmp.lt.s32.totalorder %s18, 1
        %s182 = scalar_select %p181, %s18, 1
        %s183 = smul.addr %s182, 2
        %s184 = smul.addr %s183, 4
        %s185 = scalar_lea.vmem %s0, %s184
        %p186 = pneg %p39
        %p187 = pneg %p36
        %p188 = scmp.lt.s32.totalorder %s18, 1
        %s189 = scalar_select %p188, %s18, 1
        %s190 = smul.addr %s189, 2
        %s191 = smul.addr %s190, 8
        %s192 = scalar_lea.vmem %s1, %s191
        %p193 = pneg %p65
        %p194 = pneg %p62
        %p195 = pneg %p86
        %p196 = pneg %p83
        %p197 = pneg %p107
        %p198 = pneg %p104
        %p199 = pneg %p133
        %p200 = pneg %p130
        %s201 = sand.u32 %s120, 1
        %s202 = scalar_lea.sflag [#allocation3], %s201
        %s203 = sand.u32 %s120, 1
        %s204 = smul.addr %s203, 4
        %s205 = scalar_lea.vmem [#allocation2], %s204
        %p206 = scmp.lt.s32.totalorder %s18, 1
        %s207 = scalar_select %p206, %s18, 1
        %s208 = smul.addr %s207, 2
        %s209 = smul.addr %s208, 4
        %s210 = scalar_lea.vmem %s0, %s209
        %p211 = scmp.lt.s32.totalorder %s18, 1
        %s212 = scalar_select %p211, %s18, 1
        %s213 = smul.addr %s212, 2
        %s214 = smul.addr %s213, 8
        %s215 = scalar_lea.vmem %s1, %s214
        %v217 = vld [vmem:[%s210] sm:$0xf]
        %v218 = vld [vmem:[%s210 + $0x4] sm:$0xf]
        %v219 = vld [vmem:[%s2] sm:$0xff]
        %v220 = vld [vmem:[%s2 + $0x8] sm:$0xff]
        %v221 = vld [vmem:[%s2 + $0x10] sm:$0xff]
        %v222 = vld [vmem:[%s2 + $0x18] sm:$0xff]
        %v223 = vld [vmem:[%s2 + $0x20] sm:$0xff]
        %v224 = vld [vmem:[%s2 + $0x28] sm:$0xff]
        %v227 = vunpack.c.l.b16 %v217
        %v228 = vunpack.c.l.b16 %v218
        %v229 = vpack.c.b16 %v228, %v227
        %v236 = vunpack.c.l.b16 %v219
        %v237 = vunpack.c.h.b16 %v219
        %v238 = vunpack.c.l.b16 %v220
        %v239 = vunpack.c.h.b16 %v220
        %v240 = vunpack.c.l.b16 %v221
        %v241 = vunpack.c.h.b16 %v221
        %v242 = vunpack.c.l.b16 %v222
        %v243 = vunpack.c.h.b16 %v222
        %v244 = vunpack.c.l.b16 %v223
        %v245 = vunpack.c.h.b16 %v223
        %v246 = vunpack.c.l.b16 %v224
        %v247 = vunpack.c.h.b16 %v224
        %v248 = vpack.c.b16 %v238, %v236
        %v249 = vpack.c.b16 %v239, %v237
        %v250 = vpack.c.b16 %v242, %v240
        %v251 = vpack.c.b16 %v243, %v241
        %v252 = vpack.c.b16 %v246, %v244
        %v253 = vpack.c.b16 %v247, %v245
        %vm260 = vcmask 392192
        %v262 = vsel %vm260, %v229, 0
        %264 = vmatprep.subr.bf16.mxu0 %v249
        %265 = vmatpush1.bf16.msra.mxu0 %v248
        %266 = vmatprep.subr.bf16.mxu0 %v251
        %267 = vmatpush1.bf16.msra.mxu0 %v250
        %268 = vmatprep.subr.bf16.mxu0 %v253
        %269 = vmatpush1.bf16.msra.mxu0 %v252
        %270 = vmatprep.subr.bf16.mxu0 0
        %271 = vmatpush1.bf16.msra.mxu0 0
        %272 = vmatprep.subr.bf16.mxu0 0
        %273 = vmatpush1.bf16.msra.mxu0 0
        %274 = vmatprep.subr.bf16.mxu0 0
        %275 = vmatpush1.bf16.msra.mxu0 0
        %276 = vmatprep.subr.bf16.mxu0 0
        %277 = vmatpush1.bf16.msra.mxu0 0
        %278 = vmatprep.subr.bf16.mxu0 0
        %279 = vmatpush1.bf16.msra.mxu0 0
        %280 = vmatprep.subr.bf16.mxu0 0
        %281 = vmatpush1.bf16.msra.mxu0 0
        %282 = vmatprep.subr.bf16.mxu0 0
        %283 = vmatpush1.bf16.msra.mxu0 0
        %284 = vmatprep.subr.bf16.mxu0 0
        %285 = vmatpush1.bf16.msra.mxu0 0
        %286 = vmatprep.subr.bf16.mxu0 0
        %287 = vmatpush1.bf16.msra.mxu0 0
        %288 = vmatprep.subr.bf16.mxu0 0
        %289 = vmatpush1.bf16.msra.mxu0 0
        %290 = vmatprep.subr.bf16.mxu0 0
        %291 = vmatpush1.bf16.msra.mxu0 0
        %292 = vmatprep.subr.bf16.mxu0 0
        %293 = vmatpush1.bf16.msra.mxu0 0
        %294 = vmatprep.subr.bf16.mxu0 0
        %295 = vmatpush1.bf16.msra.mxu0 0
        %296 = vmatprep.mubr.bf16.mxu0 0
        %297 = vmatmul.mubr.bf16.gmra.mrb[0].mxu0 %v262
        %v298 = vpop.f32.mrb[0].mxu0
        %v299 = vadd.f32 0.0, %v298
        %v300 = vpop.f32.mrb[0].mxu0
        %v301 = vadd.f32 0.0, %v300
        %v302 = vpop.f32.mrb[0].mxu0
        %v303 = vadd.f32 0.0, %v302
        %v304 = vpop.f32.mrb[0].mxu0
        %v305 = vadd.f32 0.0, %v304
        %306 = vdwg.mxu0
        %v307 = vld [vmem:[%s215] sm:$0xff]
        %v308 = vld [vmem:[%s215 + $0x8] sm:$0xff]
        %v309 = vmul.f32 %v299, %v307
        %v310 = vmul.f32 %v303, %v307
        %v311 = vmul.f32 %v301, %v308
        %v312 = vmul.f32 %v305, %v308
        %v313 = vsub.f32 %v309, %v311
        %v314 = vsub.f32 %v310, %v312
        %v315 = vmul.f32 %v299, %v308
        %v316 = vmul.f32 %v303, %v308
        %v317 = vmul.f32 %v301, %v307
        %v318 = vmul.f32 %v305, %v307
        %v319 = vadd.f32 %v315, %v317
        %v320 = vadd.f32 %v316, %v318
        %v321 = vpack.c.bf16 %v314, %v313
        %v322 = vpack.c.bf16 %v320, %v319
        %v323 = vld [vmem:[%s3] sm:$0xf]
        %v324 = vld [vmem:[%s3 + $0x4] sm:$0xf]
        %v325 = vld [vmem:[%s3 + $0x8] sm:$0xf]
        %v326 = vld [vmem:[%s3 + $0xc] sm:$0xf]
        %v327 = vld [vmem:[%s3 + $0x10] sm:$0xf]
        %v328 = vld [vmem:[%s3 + $0x14] sm:$0xf]
        %v329 = vld [vmem:[%s3 + $0x18] sm:$0xf]
        %v330 = vld [vmem:[%s3 + $0x1c] sm:$0xf]
        %v331 = vld [vmem:[%s3 + $0x20] sm:$0xf]
        %v332 = vld [vmem:[%s3 + $0x24] sm:$0xf]
        %v333 = vld [vmem:[%s3 + $0x28] sm:$0xf]
        %v334 = vld [vmem:[%s3 + $0x2c] sm:$0xf]
        %v335 = vld [vmem:[%s3 + $0x30] sm:$0xf]
        %v336 = vld [vmem:[%s3 + $0x34] sm:$0xf]
        %v337 = vld [vmem:[%s3 + $0x38] sm:$0xf]
        %v338 = vld [vmem:[%s3 + $0x3c] sm:$0xf]
        %v339 = vld [vmem:[%s3 + $0x40] sm:$0xf]
        %v340 = vld [vmem:[%s3 + $0x44] sm:$0xf]
        %v341 = vld [vmem:[%s3 + $0x48] sm:$0xf]
        %v342 = vld [vmem:[%s3 + $0x4c] sm:$0xf]
        %v343 = vld [vmem:[%s3 + $0x50] sm:$0xf]
        %v344 = vld [vmem:[%s3 + $0x54] sm:$0xf]
        %v345 = vld [vmem:[%s3 + $0x58] sm:$0xf]
        %v346 = vld [vmem:[%s3 + $0x5c] sm:$0xf]
        %v347 = vld [vmem:[%s3 + $0x60] sm:$0xf]
        %v348 = vld [vmem:[%s3 + $0x64] sm:$0xf]
        %v349 = vld [vmem:[%s3 + $0x68] sm:$0xf]
        %v350 = vld [vmem:[%s3 + $0x6c] sm:$0xf]
        %v351 = vld [vmem:[%s3 + $0x70] sm:$0xf]
        %v352 = vld [vmem:[%s3 + $0x74] sm:$0xf]
        %v353 = vld [vmem:[%s3 + $0x78] sm:$0xf]
        %v354 = vld [vmem:[%s3 + $0x7c] sm:$0xf]
        %v387 = vunpack.c.l.b16 %v323
        %v388 = vunpack.c.l.b16 %v324
        %v389 = vunpack.c.l.b16 %v325
        %v390 = vunpack.c.l.b16 %v326
        %v391 = vunpack.c.l.b16 %v327
        %v392 = vunpack.c.l.b16 %v328
        %v393 = vunpack.c.l.b16 %v329
        %v394 = vunpack.c.l.b16 %v330
        %v395 = vunpack.c.l.b16 %v331
        %v396 = vunpack.c.l.b16 %v332
        %v397 = vunpack.c.l.b16 %v333
        %v398 = vunpack.c.l.b16 %v334
        %v399 = vunpack.c.l.b16 %v335
        %v400 = vunpack.c.l.b16 %v336
        %v401 = vunpack.c.l.b16 %v337
        %v402 = vunpack.c.l.b16 %v338
        %v403 = vunpack.c.l.b16 %v339
        %v404 = vunpack.c.l.b16 %v340
        %v405 = vunpack.c.l.b16 %v341
        %v406 = vunpack.c.l.b16 %v342
        %v407 = vunpack.c.l.b16 %v343
        %v408 = vunpack.c.l.b16 %v344
        %v409 = vunpack.c.l.b16 %v345
        %v410 = vunpack.c.l.b16 %v346
        %v411 = vunpack.c.l.b16 %v347
        %v412 = vunpack.c.l.b16 %v348
        %v413 = vunpack.c.l.b16 %v349
        %v414 = vunpack.c.l.b16 %v350
        %v415 = vunpack.c.l.b16 %v351
        %v416 = vunpack.c.l.b16 %v352
        %v417 = vunpack.c.l.b16 %v353
        %v418 = vunpack.c.l.b16 %v354
        %v419 = vpack.c.b16 %v388, %v387
        %v420 = vpack.c.b16 %v390, %v389
        %v421 = vpack.c.b16 %v392, %v391
        %v422 = vpack.c.b16 %v394, %v393
        %v423 = vpack.c.b16 %v396, %v395
        %v424 = vpack.c.b16 %v398, %v397
        %v425 = vpack.c.b16 %v400, %v399
        %v426 = vpack.c.b16 %v402, %v401
        %v427 = vpack.c.b16 %v404, %v403
        %v428 = vpack.c.b16 %v406, %v405
        %v429 = vpack.c.b16 %v408, %v407
        %v430 = vpack.c.b16 %v410, %v409
        %v431 = vpack.c.b16 %v412, %v411
        %v432 = vpack.c.b16 %v414, %v413
        %v433 = vpack.c.b16 %v416, %v415
        %v434 = vpack.c.b16 %v418, %v417
        %451 = vmatprep.subr.bf16.mxu0 0
        %452 = vmatpush1.bf16.msra.mxu0 %v419
        %453 = vmatprep.subr.bf16.mxu0 0
        %454 = vmatpush1.bf16.msra.mxu0 %v420
        %455 = vmatprep.subr.bf16.mxu0 0
        %456 = vmatpush1.bf16.msra.mxu0 %v421
        %457 = vmatprep.subr.bf16.mxu0 0
        %458 = vmatpush1.bf16.msra.mxu0 %v422
        %459 = vmatprep.subr.bf16.mxu0 0
        %460 = vmatpush1.bf16.msra.mxu0 %v423
        %461 = vmatprep.subr.bf16.mxu0 0
        %462 = vmatpush1.bf16.msra.mxu0 %v424
        %463 = vmatprep.subr.bf16.mxu0 0
        %464 = vmatpush1.bf16.msra.mxu0 %v425
        %465 = vmatprep.subr.bf16.mxu0 0
        %466 = vmatpush1.bf16.msra.mxu0 %v426
        %467 = vmatprep.subr.bf16.mxu0 0
        %468 = vmatpush1.bf16.msra.mxu0 %v427
        %469 = vmatprep.subr.bf16.mxu0 0
        %470 = vmatpush1.bf16.msra.mxu0 %v428
        %471 = vmatprep.subr.bf16.mxu0 0
        %472 = vmatpush1.bf16.msra.mxu0 %v429
        %473 = vmatprep.subr.bf16.mxu0 0
        %474 = vmatpush1.bf16.msra.mxu0 %v430
        %475 = vmatprep.subr.bf16.mxu0 0
        %476 = vmatpush1.bf16.msra.mxu0 %v431
        %477 = vmatprep.subr.bf16.mxu0 0
        %478 = vmatpush1.bf16.msra.mxu0 %v432
        %479 = vmatprep.subr.bf16.mxu0 0
        %480 = vmatpush1.bf16.msra.mxu0 %v433
        %481 = vmatprep.subr.bf16.mxu0 0
        %482 = vmatpush1.bf16.msra.mxu0 %v434
        %483 = vmatprep.mubr.bf16.mxu0 %v322
        %484 = vmatmul.mubr.bf16.gmra.mrb[0].mxu0 %v321
        %v485 = vpop.f32.mrb[0].mxu0
        %v486 = vadd.f32 0.0, %v485
        %v487 = vpop.f32.mrb[0].mxu0
        %v488 = vpop.f32.mrb[0].mxu0
        %v489 = vadd.f32 0.0, %v488
        %v490 = vpop.f32.mrb[0].mxu0
        %491 = vdwg.mxu0
        %v494 = vrot.slane %v486, 7
        %v495 = vrot.slane %v489, 7
        %496 = vrot.lane.b32.xlu0 %v494, 116
        %v497 = vpop.permute.xlu0 %496
        %498 = vrot.lane.b32.xlu0 %v495, 116
        %v499 = vpop.permute.xlu0 %498
        %vm502 = vcmask 1040384
        %v503 = vsel %vm502, 0.0, %v497
        %v504 = vsel %vm502, 0.0, %v499
        %v505 = vsel %vm502, %v497, 0.0
        %v506 = vsel %vm502, %v499, 0.0
        %v507 = vadd.f32 %v486, %v503
        %v508 = vadd.f32 %v505, 0.0
        %v509 = vadd.f32 %v489, %v504
        %v510 = vadd.f32 %v506, 0.0
        %v511 = vrot.slane %v486, 6
        %v512 = vrot.slane %v489, 6
        %513 = vrot.lane.b32.xlu0 %v511, 104
        %v514 = vpop.permute.xlu0 %513
        %515 = vrot.lane.b32.xlu0 %v512, 104
        %v516 = vpop.permute.xlu0 %515
        %vm519 = vcmask 1041408
        %v520 = vsel %vm519, 0.0, %v514
        %v521 = vsel %vm519, 0.0, %v516
        %v522 = vsel %vm519, %v514, 0.0
        %v523 = vsel %vm519, %v516, 0.0
        %v524 = vadd.f32 %v507, %v520
        %v525 = vadd.f32 %v508, %v522
        %v526 = vadd.f32 %v509, %v521
        %v527 = vadd.f32 %v510, %v523
        %v528 = vrot.slane %v486, 5
        %v529 = vrot.slane %v489, 5
        %530 = vrot.lane.b32.xlu0 %v528, 92
        %v531 = vpop.permute.xlu0 %530
        %532 = vrot.lane.b32.xlu0 %v529, 92
        %v533 = vpop.permute.xlu0 %532
        %vm536 = vcmask 1042432
        %v537 = vsel %vm536, 0.0, %v531
        %v538 = vsel %vm536, 0.0, %v533
        %v539 = vadd.f32 %v524, %v537
        %v540 = vadd.f32 %v526, %v538
        %v541 = vcombine.high %v539, 0.0
        %v543 = vunpack.c.l.s4 1983009808
        %v544 = vunpack.c.0.s8 %v543
        %v545 = vlaneseq
        %v546 = vshrl.u32 %v545, 7
        %v547 = vsub.s32 %v544, %v546
        %v548 = vrot.slane %v539, %v547
        %v550 = vunpack.c.l.s4 1983009808
        %v551 = vunpack.c.0.s8 %v550
        %v552 = vlaneseq
        %v553 = vshrl.u32 %v552, 7
        %v554 = vsub.s32 %v551, %v553
        %v555 = vrot.slane %v541, %v554
        %v556 = vcombine.high %v540, 0.0
        %v558 = vunpack.c.l.s4 1983009808
        %v559 = vunpack.c.0.s8 %v558
        %v560 = vlaneseq
        %v561 = vshrl.u32 %v560, 7
        %v562 = vsub.s32 %v559, %v561
        %v563 = vrot.slane %v540, %v562
        %v565 = vunpack.c.l.s4 1983009808
        %v566 = vunpack.c.0.s8 %v565
        %v567 = vlaneseq
        %v568 = vshrl.u32 %v567, 7
        %v569 = vsub.s32 %v566, %v568
        %v570 = vrot.slane %v556, %v569
        %v571 = vcombine.low %v548, %v563
        %v572 = vcombine.high %v548, %v563
        %v574 = vunpack.c.l.s4 1934713408
        %v575 = vunpack.c.0.s8 %v574
        %v576 = vlaneseq
        %v577 = vshrl.u32 %v576, 7
        %v578 = vsub.s32 %v575, %v577
        %v579 = vrot.slane %v571, %v578
        %v581 = vunpack.c.l.s4 1934713408
        %v582 = vunpack.c.0.s8 %v581
        %v583 = vlaneseq
        %v584 = vshrl.u32 %v583, 7
        %v585 = vsub.s32 %v582, %v584
        %v586 = vrot.slane %v572, %v585
        %v587 = vcombine.low %v555, %v570
        %v588 = vcombine.high %v555, %v570
        %v590 = vunpack.c.l.s4 1934713408
        %v591 = vunpack.c.0.s8 %v590
        %v592 = vlaneseq
        %v593 = vshrl.u32 %v592, 7
        %v594 = vsub.s32 %v591, %v593
        %v595 = vrot.slane %v587, %v594
        %v597 = vunpack.c.l.s4 1934713408
        %v598 = vunpack.c.0.s8 %v597
        %v599 = vlaneseq
        %v600 = vshrl.u32 %v599, 7
        %v601 = vsub.s32 %v598, %v600
        %v602 = vrot.slane %v588, %v601
        %v603 = vcombine.high %v579, 0.0
        %v604 = vcombine.high %v586, 0.0
        %v605 = vcombine.high %v595, 0.0
        %v606 = vcombine.high %v602, 0.0
        %v607 = vadd.f32 %v525, %v531
        %v609 = vunpack.c.l.s4 1983009808
        %v610 = vunpack.c.0.s8 %v609
        %v611 = vlaneseq
        %v612 = vshrl.u32 %v611, 7
        %v613 = vsub.s32 %v610, %v612
        %v614 = vrot.slane %v607, %v613
        %v615 = vadd.f32 %v527, %v533
        %v617 = vunpack.c.l.s4 1983009808
        %v618 = vunpack.c.0.s8 %v617
        %v619 = vlaneseq
        %v620 = vshrl.u32 %v619, 7
        %v621 = vsub.s32 %v618, %v620
        %v622 = vrot.slane %v615, %v621
        %v623 = vcombine.low %v614, %v622
        %v624 = vcombine.high %v614, %v622
        %v626 = vunpack.c.l.s4 1934713408
        %v627 = vunpack.c.0.s8 %v626
        %v628 = vlaneseq
        %v629 = vshrl.u32 %v628, 7
        %v630 = vsub.s32 %v627, %v629
        %v631 = vrot.slane %v623, %v630
        %v632 = vcombine.high %v631, 0.0
        %v634 = vunpack.c.l.s4 1934713408
        %v635 = vunpack.c.0.s8 %v634
        %v636 = vlaneseq
        %v637 = vshrl.u32 %v636, 7
        %v638 = vsub.s32 %v635, %v637
        %v639 = vrot.slane %v624, %v638
        %641 = vrot.lane.b32.xlu0 %v603, 12
        %v642 = vpop.permute.xlu0 %641
        %645 = vrot.lane.b32.xlu0 %v586, 24
        %v646 = vpop.permute.xlu0 %645
        %649 = vrot.lane.b32.xlu0 %v604, 36
        %v650 = vpop.permute.xlu0 %649
        %653 = vrot.lane.b32.xlu0 %v595, 48
        %v654 = vpop.permute.xlu0 %653
        %657 = vrot.lane.b32.xlu0 %v605, 60
        %v658 = vpop.permute.xlu0 %657
        %661 = vrot.lane.b32.xlu0 %v602, 72
        %v662 = vpop.permute.xlu0 %661
        %665 = vrot.lane.b32.xlu0 %v606, 84
        %v666 = vpop.permute.xlu0 %665
        %669 = vrot.lane.b32.xlu0 %v631, 96
        %v670 = vpop.permute.xlu0 %669
        %673 = vrot.lane.b32.xlu0 %v632, 108
        %v674 = vpop.permute.xlu0 %673
        %677 = vrot.lane.b32.xlu0 %v639, 120
        %v678 = vpop.permute.xlu0 %677
        %vm680 = vcmask 97280
        %v681 = vsel %vm680, %v579, %v642
        %vm682 = vcmask 195584
        %v683 = vsel %vm682, %v681, %v646
        %vm684 = vcmask 293888
        %v685 = vsel %vm684, %v683, %v650
        %v686 = vsel %vm260, %v685, %v654
        %vm687 = vcmask 490496
        %v688 = vsel %vm687, %v686, %v658
        %vm689 = vcmask 588800
        %v690 = vsel %vm689, %v688, %v662
        %vm691 = vcmask 687104
        %v692 = vsel %vm691, %v690, %v666
        %vm693 = vcmask 785408
        %v694 = vsel %vm693, %v692, %v670
        %vm695 = vcmask 883712
        %v696 = vsel %vm695, %v694, %v674
        %vm697 = vcmask 982016
        %v698 = vsel %vm697, %v696, %v678
        %vm699 = vcmask 31744
        %v700 = vsel %vm699, %v678, 0.0
        %v703 = vcombine.low %v698, %v700
        %v705 = vunpack.c.l.s4 1983009808
        %v706 = vunpack.c.0.s8 %v705
        %v707 = vlaneseq
        %v708 = vshrl.u32 %v707, 7
        %v709 = vsub.s32 %v706, %v708
        %v710 = vrot.slane %v703, %v709
        %712 = vst [vmem:[%s205] sm:$0xf] %v710
        %s713 = sand.u32 %s120, 1
        %s714 = scalar_lea.sflag [#allocation3], %s713
        %s715 = sand.u32 %s120, 1
        %s716 = smul.addr %s715, 4
        %s717 = scalar_lea.vmem [#allocation2], %s716
        // Predicated region
        $region37: #{tpu_custom_call.1} parent=35 // pred_check
          %p718 = pneg %p130
        $region38: #{tpu_custom_call.1} parent=35 // pred_check_branch
          %720 = sbr.rel (%p718) target = $region40
        $region39: #{tpu_custom_call.1} parent=35 // pred_region
          %s722 = ssub.s32 64, 64
          %723 = vsyncadd %s714, %s722
          %s724 = smul.addr %s18, 2
          %s725 = smul.addr %s724, 32
          %s726 = scalar_lea.hbm %s4, %s725
          %s728 = sshll.u32 %s717, 4
          %s729 = int_to_ptr.vmem [resolvable:$true] %s728
          %731 = dma.vmem_to_hbm [thread:$0]  %s729, 64, %s726, %s714
        $region40: #{tpu_custom_call.1} parent=35 // pred_fallthru
          _
      $region36: #{tpu_custom_call.1} parent=5 // pred_fallthru
        _
      %p732 = scmp.le.s32.totalorder 2, %s13
      // Predicated region
      $region41: #{tpu_custom_call.1} parent=5 // pred_check
        %p733 = pneg %p732
      $region42: #{tpu_custom_call.1} parent=5 // pred_check_branch
        %735 = sbr.rel (%p733) target = $region44
      $region43: #{tpu_custom_call.1} parent=5 // pred_region
        %s736 = ssub.s32 %s13, 2
        // Predicated region
        $region45: #{tpu_custom_call.1} parent=43 // pred_check
          %p737 = pneg %p136
        $region46: #{tpu_custom_call.1} parent=43 // pred_check_branch
          %739 = sbr.rel (%p737) target = $region48
        $region47: #{tpu_custom_call.1} parent=43 // pred_region
          %s740 = sand.u32 %s121, 1
          %s741 = scalar_lea.sflag [#allocation3], %s740
          %s742 = sand.u32 %s121, 1
          %s743 = smul.addr %s742, 4
          %s744 = scalar_lea.vmem [#allocation2], %s743
          %745 = dma.done %s741, 64
        $region48: #{tpu_custom_call.1} parent=43 // pred_fallthru
          _
      $region44: #{tpu_custom_call.1} parent=5 // pred_fallthru
        _
    $region6: #{tpu_custom_call.1} parent=1 // loop_footer
      %s17 = sadd.s32 1, %s13
    $region7: #{tpu_custom_call.1} parent=1 // loop_footer_branch
      %12 = sbr.rel target = $region3
    $region8: #{tpu_custom_call.1} parent=1 // loop_exit
      _
    %746 = vsyncpa [#allocation3], 1
    %s747 = scalar_lea.sflag [#allocation3], 1
    %748 = vsyncpa %s747, 1

</llo_original>
